<compile_context>
chip_gen: v7x
topology: tpu7x:2x2x1
jax: 0.10.0
libtpu: 0.0.40
codegen_flags: <defaults>
</compile_context>

<pallas_src>
import jax
import jax.numpy as jnp
from jax.experimental import pallas as pl
from jax.experimental.pallas import tpu as pltpu


def _pick_tile(dim, preferred):
    # Use `preferred` if it evenly divides `dim`; otherwise fall back to the
    # full extent (full-extent blocks are exempt from the (8,128) rule).
    return preferred if dim % preferred == 0 else dim


def patch_embed_matmul_kernel(p_ref, w_ref, b_ref, o_ref, acc_ref):
    # p_ref: (tm, tk) patch rows, w_ref: (tk, tn) weight.T tile,
    # b_ref: (1, tn) bias tile, o_ref: (tm, tn) output tile,
    # acc_ref: (tm, tn) f32 accumulator scratch (resident across the K axis).
    @pl.when(pl.program_id(2) == 0)
    def _():
        acc_ref[...] = jnp.zeros_like(acc_ref)

    acc_ref[...] += jnp.dot(p_ref[...], w_ref[...],
                            preferred_element_type=jnp.float32)

    @pl.when(pl.program_id(2) == pl.num_programs(2) - 1)
    def _():
        o_ref[...] = (acc_ref[...] + b_ref[...]).astype(o_ref.dtype)


def patch_embedding_forward(x, weight, bias, patch_size):
    """x: (B, C, H, W), weight: (E, C*p*p), bias: (E,) -> (B, L, E)."""
    B, C, H, W = x.shape
    p = patch_size
    assert H % p == 0 and W % p == 0
    nh, nw = H // p, W // p
    L = nh * nw
    K = C * p * p
    E = weight.shape[0]
    assert weight.shape == (E, K) and bias.shape == (E,)

    # ---- unfold + transpose: pure layout plumbing, kept outside the kernel.
    # Matches nn.Unfold's channel-major ordering: feature index c*p*p + i*p + j,
    # patch index ph*nw + pw.
    patches = x.reshape(B, C, nh, p, nw, p)
    patches = patches.transpose(0, 2, 4, 1, 3, 5)        # (B, nh, nw, C, p, p)
    patches = patches.reshape(B * L, K)                  # (M, K)

    w_t = weight.T                                       # (K, E)
    b2 = bias.reshape(1, E)                              # (1, E)

    M = B * L
    tm = _pick_tile(M, 128)   # >=128 rows per step when possible (amortizes
    tn = _pick_tile(E, 128)   # the ~0.35us per-step overhead, lane-dense out)
    tk = _pick_tile(K, 256)

    out = pl.pallas_call(
        patch_embed_matmul_kernel,
        out_shape=jax.ShapeDtypeStruct((M, E), x.dtype),
        grid_spec=pltpu.PrefetchScalarGridSpec(
            num_scalar_prefetch=0,
            grid=(M // tm, E // tn, K // tk),
            in_specs=[
                pl.BlockSpec((tm, tk), lambda i, j, k: (i, k)),
                pl.BlockSpec((tk, tn), lambda i, j, k: (k, j)),
                pl.BlockSpec((1, tn), lambda i, j, k: (0, j)),
            ],
            out_specs=pl.BlockSpec((tm, tn), lambda i, j, k: (i, j)),
            scratch_shapes=[pltpu.VMEM((tm, tn), jnp.float32)],
        ),
        compiler_params=pltpu.CompilerParams(
            dimension_semantics=("parallel", "parallel", "arbitrary"),
        ),
    )(patches, w_t, b2)

    return out.reshape(B, L, E)


if __name__ == "__main__":
    key = jax.random.PRNGKey(0)
    kx, kw, kb = jax.random.split(key, 3)

    # Small shapes consistent with the module: img_size=16, patch_size=4,
    # in_channels=4, embed_dim=32 -> num_patches=16, patch_dim=64.
    B, C, img, p, E = 2, 4, 16, 4, 32
    K = C * p * p
    L = (img // p) ** 2

    x = jax.random.normal(kx, (B, C, img, img), dtype=jnp.float32)
    weight = jax.random.normal(kw, (E, K), dtype=jnp.float32) * 0.02
    bias = jax.random.normal(kb, (E,), dtype=jnp.float32) * 0.02

    out = patch_embedding_forward(x, weight, bias, p)
    out = jax.block_until_ready(out)

    # Pure-JAX reference of the PyTorch semantics (unfold -> transpose -> linear).
    nh = nw = img // p
    ref_patches = x.reshape(B, C, nh, p, nw, p).transpose(0, 2, 4, 1, 3, 5)
    ref_patches = ref_patches.reshape(B, L, K)
    ref = ref_patches @ weight.T + bias

    assert out.shape == (B, L, E)
    assert jnp.allclose(out, ref, atol=1e-5, rtol=1e-5), "mismatch vs reference"

    print("KERNEL_OK")
</pallas_src>

<mosaic_0001>
module attributes {stable_mosaic.version = 11 : i64} {
  func.func @patch_embed_matmul_kernel(%arg0: i32, %arg1: i32, %arg2: i32, %arg3: memref<32x64xf32, #tpu.memory_space<vmem>>, %arg4: memref<64x32xf32, #tpu.memory_space<vmem>>, %arg5: memref<1x32xf32, #tpu.memory_space<vmem>>, %arg6: memref<32x32xf32, #tpu.memory_space<vmem>>, %arg7: memref<32x32xf32, #tpu.memory_space<vmem>>) attributes {dimension_semantics = [#tpu.dimension_semantics<parallel>, #tpu.dimension_semantics<parallel>, #tpu.dimension_semantics<arbitrary>], iteration_bounds = array<i64: 1, 1, 1>, scalar_prefetch = 0 : i64, scratch_operands = 1 : i64, tpu.core_type = #tpu.core_type<tc>, window_params = [{transform_indices = @transform_0, window_bounds = array<i64: 32, 64>}, {transform_indices = @transform_1, window_bounds = array<i64: 64, 32>}, {transform_indices = @transform_2, window_bounds = array<i64: 1, 32>}, {transform_indices = @transform_3, window_bounds = array<i64: 32, 32>}]} {
    %c0_i32 = arith.constant 0 : i32
    %0 = arith.cmpi eq, %arg2, %c0_i32 : i32
    %1 = arith.extui %0 : i1 to i32
    %c0_i32_0 = arith.constant 0 : i32
    %2 = arith.cmpi ne, %1, %c0_i32_0 : i32
    scf.if %2 {
      %cst_10 = arith.constant 0.000000e+00 : f32
      %12 = vector.broadcast %cst_10 : f32 to vector<32x32xf32>
      %c0_11 = arith.constant 0 : index
      %c0_12 = arith.constant 0 : index
      %13 = vector.load %arg7[%c0_11, %c0_12] : memref<32x32xf32, #tpu.memory_space<vmem>>, vector<32x32xf32>
      tpu.vector_store %arg7[%c0_11, %c0_12], %12 {strides = array<i32>} : memref<32x32xf32, #tpu.memory_space<vmem>>, vector<32x32xf32>,
    } else {
    }
    %c0 = arith.constant 0 : index
    %c0_1 = arith.constant 0 : index
    %3 = vector.load %arg7[%c0, %c0_1] : memref<32x32xf32, #tpu.memory_space<vmem>>, vector<32x32xf32>
    %c0_2 = arith.constant 0 : index
    %c0_3 = arith.constant 0 : index
    %4 = vector.load %arg3[%c0_2, %c0_3] : memref<32x64xf32, #tpu.memory_space<vmem>>, vector<32x64xf32>
    %c0_4 = arith.constant 0 : index
    %c0_5 = arith.constant 0 : index
    %5 = vector.load %arg4[%c0_4, %c0_5] : memref<64x32xf32, #tpu.memory_space<vmem>>, vector<64x32xf32>
    %cst = arith.constant dense<0.000000e+00> : vector<32x32xf32>
    %6 = tpu.matmul %4, %5, %cst {dimension_numbers = #tpu.dot_dimension_numbers<[1], [0], [0], [1], [0, 0, 1, 1], [], []>} : vector<32x64xf32>, vector<64x32xf32>, vector<32x32xf32> -> vector<32x32xf32>
    %7 = arith.addf %3, %6 : vector<32x32xf32>
    %c0_6 = arith.constant 0 : index
    %c0_7 = arith.constant 0 : index
    %8 = vector.load %arg7[%c0_6, %c0_7] : memref<32x32xf32, #tpu.memory_space<vmem>>, vector<32x32xf32>
    tpu.vector_store %arg7[%c0_6, %c0_7], %7 {strides = array<i32>} : memref<32x32xf32, #tpu.memory_space<vmem>>, vector<32x32xf32>,
    %c0_i32_8 = arith.constant 0 : i32
    %9 = arith.cmpi eq, %arg2, %c0_i32_8 : i32
    %10 = arith.extui %9 : i1 to i32
    %c0_i32_9 = arith.constant 0 : i32
    %11 = arith.cmpi ne, %10, %c0_i32_9 : i32
    scf.if %11 {
      %c0_10 = arith.constant 0 : index
      %c0_11 = arith.constant 0 : index
      %12 = vector.load %arg7[%c0_10, %c0_11] : memref<32x32xf32, #tpu.memory_space<vmem>>, vector<32x32xf32>
      %c0_12 = arith.constant 0 : index
      %c0_13 = arith.constant 0 : index
      %13 = vector.load %arg5[%c0_12, %c0_13] : memref<1x32xf32, #tpu.memory_space<vmem>>, vector<1x32xf32>
      %14 = vector.broadcast %13 : vector<1x32xf32> to vector<32x32xf32>
      %15 = arith.addf %12, %14 : vector<32x32xf32>
      %c0_14 = arith.constant 0 : index
      %c0_15 = arith.constant 0 : index
      %16 = vector.load %arg6[%c0_14, %c0_15] : memref<32x32xf32, #tpu.memory_space<vmem>>, vector<32x32xf32>
      tpu.vector_store %arg6[%c0_14, %c0_15], %15 {strides = array<i32>} : memref<32x32xf32, #tpu.memory_space<vmem>>, vector<32x32xf32>,
    } else {
    }
    return
  }
  func.func @transform_0(%arg0: i32, %arg1: i32, %arg2: i32) -> (i32, i32) {
    %c0_i32 = arith.constant 0 : i32
    return %arg0, %arg2 : i32, i32
  }
  func.func @transform_1(%arg0: i32, %arg1: i32, %arg2: i32) -> (i32, i32) {
    %c0_i32 = arith.constant 0 : i32
    return %arg2, %arg1 : i32, i32
  }
  func.func @transform_2(%arg0: i32, %arg1: i32, %arg2: i32) -> (i32, i32) {
    %c0_i32 = arith.constant 0 : i32
    %c0_i32_0 = arith.constant 0 : i32
    return %c0_i32, %arg1 : i32, i32
  }
  func.func @transform_3(%arg0: i32, %arg1: i32, %arg2: i32) -> (i32, i32) {
    %c0_i32 = arith.constant 0 : i32
    return %arg0, %arg1 : i32, i32
  }
}

</mosaic_0001>

<llo_original>
// kernel: tpu_custom_call.1
$region0: #{tpu_custom_call.1}
  #allocation0 [shape = 'u32[]', space=smem, size = 0x4, offset = 0x4, fixed_abs, tag = 'smem constant byte address 0x4 - core index']
  #allocation1 [shape = 'u32[144,128]{1,0:T(1,128)}', space=vmem, size = 0x12000, scoped, tag = 'internal scratch']
  #allocation2 [shape = 'f32[32,32]{1,0:T(8,128)}', space=vmem, size = 0x4000, scoped, tag = 'scratch operand']
  %s0 = inlined_call_operand.vmem [shape: f32[32,64], index: 0, kind: input, shape index: {}]
  %s1 = inlined_call_operand.vmem [shape: f32[64,32], index: 1, kind: input, shape index: {}]
  %s2 = inlined_call_operand.vmem [shape: f32[1,32], index: 2, kind: input, shape index: {}]
  %s3 = inlined_call_operand.hbm [shape: f32[32,32], index: 3, kind: output, shape index: {}]
  %s4 = sld [smem:[#allocation0]]
  $region30: #{tpu_custom_call.1} parent=0
    _
  %s6 = ssub.s32 1, %s4
  %s7 = scalar_select 0, %s6, %s4
  $region1: #{tpu_custom_call.1} parent=0
    #allocation3 [shape = 'u8[16384]{0}', space=vmem, size = 0x4000, scoped, tag = 'output window, operand 0, single buffered']
    #allocation4 [shape = 's32[1]{0}', space=sflag, size = 0x4, scoped, tag = 'scoped memory for tpu_custom_call.1']
    %8 = vsyncpa [#allocation4], 0
    // Predicated region
    $region2: #{tpu_custom_call.1} parent=1 // pred_check
      _
    $region3: #{tpu_custom_call.1} parent=1 // pred_check_branch
      %10 = sbr.rel (0) target = $region5
    $region4: #{tpu_custom_call.1} parent=1 // pred_region
      _
    $region5: #{tpu_custom_call.1} parent=1 // pred_fallthru
      _
    // Predicated region
    $region6: #{tpu_custom_call.1} parent=1 // pred_check
      _
    $region7: #{tpu_custom_call.1} parent=1 // pred_check_branch
      %12 = sbr.rel (0) target = $region9
    $region8: #{tpu_custom_call.1} parent=1 // pred_region
      _
    $region9: #{tpu_custom_call.1} parent=1 // pred_fallthru
      _
    // Predicated region
    $region10: #{tpu_custom_call.1} parent=1 // pred_check
      _
    $region11: #{tpu_custom_call.1} parent=1 // pred_check_branch
      %14 = sbr.rel (0) target = $region13
    $region12: #{tpu_custom_call.1} parent=1 // pred_region
      _
    $region13: #{tpu_custom_call.1} parent=1 // pred_fallthru
      _
    %p15 = scmp.eq.s32.totalorder 0, 0
    // Predicated region
    $region14: #{tpu_custom_call.1} parent=1 // pred_check
      %p16 = pneg %p15
    $region15: #{tpu_custom_call.1} parent=1 // pred_check_branch
      %18 = sbr.rel (%p16) target = $region17
    $region16: #{tpu_custom_call.1} parent=1 // pred_region
      %vm19 = vcmask 261120
      %20 = vst.msk [vmem:[#allocation2] sm:$0xff] %vm19, 0.0
      %21 = vst.msk [vmem:[#allocation2 + $0x8] sm:$0xff] %vm19, 0.0
      %22 = vst.msk [vmem:[#allocation2 + $0x10] sm:$0xff] %vm19, 0.0
      %23 = vst.msk [vmem:[#allocation2 + $0x18] sm:$0xff] %vm19, 0.0
    $region17: #{tpu_custom_call.1} parent=1 // pred_fallthru
      _
    %v24 = vld [vmem:[#allocation2] sm:$0xff]
    %v25 = vld [vmem:[#allocation2 + $0x8] sm:$0xff]
    %v26 = vld [vmem:[#allocation2 + $0x10] sm:$0xff]
    %v27 = vld [vmem:[#allocation2 + $0x18] sm:$0xff]
    %v28 = vld [vmem:[%s0] sm:$0xff]
    %v29 = vld [vmem:[%s0 + $0x8] sm:$0xff]
    %v30 = vld [vmem:[%s0 + $0x10] sm:$0xff]
    %v31 = vld [vmem:[%s0 + $0x18] sm:$0xff]
    %v32 = vld [vmem:[%s1] sm:$0xff]
    %v33 = vld [vmem:[%s1 + $0x8] sm:$0xff]
    %v34 = vld [vmem:[%s1 + $0x10] sm:$0xff]
    %v35 = vld [vmem:[%s1 + $0x18] sm:$0xff]
    %v36 = vld [vmem:[%s1 + $0x20] sm:$0xff]
    %v37 = vld [vmem:[%s1 + $0x28] sm:$0xff]
    %v38 = vld [vmem:[%s1 + $0x30] sm:$0xff]
    %v39 = vld [vmem:[%s1 + $0x38] sm:$0xff]
    %vm40 = vcmask 523264
    %v42 = vsel %vm40, %v28, 0
    %v45 = vsel %vm40, %v29, 0
    %v48 = vsel %vm40, %v30, 0
    %v51 = vsel %vm40, %v31, 0
    %53 = vmatprep.subr.mxu0 0.0
    %54 = vmatpush1.msra.mxu0 %v32
    %55 = vmatprep.subr.mxu0 0.0
    %56 = vmatpush1.msra.mxu0 %v33
    %57 = vmatprep.subr.mxu0 0.0
    %58 = vmatpush1.msra.mxu0 %v34
    %59 = vmatprep.subr.mxu0 0.0
    %60 = vmatpush1.msra.mxu0 %v35
    %61 = vmatprep.subr.mxu0 0.0
    %62 = vmatpush1.msra.mxu0 %v36
    %63 = vmatprep.subr.mxu0 0.0
    %64 = vmatpush1.msra.mxu0 %v37
    %65 = vmatprep.subr.mxu0 0.0
    %66 = vmatpush1.msra.mxu0 %v38
    %67 = vmatprep.subr.mxu0 0.0
    %68 = vmatpush1.msra.mxu0 %v39
    %69 = vmatprep.subr.mxu0 0.0
    %70 = vmatpush1.msra.mxu0 0.0
    %71 = vmatprep.subr.mxu0 0.0
    %72 = vmatpush1.msra.mxu0 0.0
    %73 = vmatprep.subr.mxu0 0.0
    %74 = vmatpush1.msra.mxu0 0.0
    %75 = vmatprep.subr.mxu0 0.0
    %76 = vmatpush1.msra.mxu0 0.0
    %77 = vmatprep.subr.mxu0 0.0
    %78 = vmatpush1.msra.mxu0 0.0
    %79 = vmatprep.subr.mxu0 0.0
    %80 = vmatpush1.msra.mxu0 0.0
    %81 = vmatprep.subr.mxu0 0.0
    %82 = vmatpush1.msra.mxu0 0.0
    %83 = vmatprep.subr.mxu0 0.0
    %84 = vmatpush1.msra.mxu0 0.0
    %85 = vmatprep.subr.mxu0 0.0
    %86 = vmatpush1.msra.mxu0 0.0
    %87 = vmatprep.subr.mxu0 0.0
    %88 = vmatpush1.msra.mxu0 0.0
    %89 = vmatprep.subr.mxu0 0.0
    %90 = vmatpush1.msra.mxu0 0.0
    %91 = vmatprep.subr.mxu0 0.0
    %92 = vmatpush1.msra.mxu0 0.0
    %93 = vmatprep.subr.mxu0 0.0
    %94 = vmatpush1.msra.mxu0 0.0
    %95 = vmatprep.subr.mxu0 0.0
    %96 = vmatpush1.msra.mxu0 0.0
    %97 = vmatprep.subr.mxu0 0.0
    %98 = vmatpush1.msra.mxu0 0.0
    %99 = vmatprep.subr.mxu0 0.0
    %100 = vmatpush1.msra.mxu0 0.0
    %101 = vmatprep.subr.mxu0 0.0
    %102 = vmatpush1.msra.mxu0 0.0
    %103 = vmatprep.subr.mxu0 0.0
    %104 = vmatpush1.msra.mxu0 0.0
    %105 = vmatprep.subr.mxu0 0.0
    %106 = vmatpush1.msra.mxu0 0.0
    %107 = vmatprep.subr.mxu0 0.0
    %108 = vmatpush1.msra.mxu0 0.0
    %109 = vmatprep.subr.mxu0 0.0
    %110 = vmatpush1.msra.mxu0 0.0
    %111 = vmatprep.subr.mxu0 0.0
    %112 = vmatpush1.msra.mxu0 0.0
    %113 = vmatprep.subr.mxu0 0.0
    %114 = vmatpush1.msra.mxu0 0.0
    %115 = vmatprep.subr.mxu0 0.0
    %116 = vmatpush1.msra.mxu0 0.0
    %117 = vmatprep.mubr.f32.mxu0 0.0
    %118 = vmatmul.mubr.f32.gmra.mrb[0].mxu0 %v42
    %v119 = vpop.f32.mrb[0].mxu0
    %v120 = vadd.f32 0.0, %v119
    %v121 = vpop.f32.mrb[0].mxu0
    %122 = vmatprep.mubr.f32.mxu0 0.0
    %123 = vmatmul.mubr.f32.gmra.mrb[0].mxu0 %v45
    %v124 = vpop.f32.mrb[0].mxu0
    %v125 = vadd.f32 0.0, %v124
    %v126 = vpop.f32.mrb[0].mxu0
    %127 = vmatprep.mubr.f32.mxu0 0.0
    %128 = vmatmul.mubr.f32.gmra.mrb[0].mxu0 %v48
    %v129 = vpop.f32.mrb[0].mxu0
    %v130 = vadd.f32 0.0, %v129
    %v131 = vpop.f32.mrb[0].mxu0
    %132 = vmatprep.mubr.f32.mxu0 0.0
    %133 = vmatmul.mubr.f32.gmra.mrb[0].mxu0 %v51
    %v134 = vpop.f32.mrb[0].mxu0
    %v135 = vadd.f32 0.0, %v134
    %v136 = vpop.f32.mrb[0].mxu0
    %137 = vdwg.mxu0
    %v138 = vadd.f32 %v24, %v120
    %v139 = vadd.f32 %v25, %v125
    %v140 = vadd.f32 %v26, %v130
    %v141 = vadd.f32 %v27, %v135
    %vm142 = vcmask 261120
    %143 = vst.msk [vmem:[#allocation2] sm:$0xff] %vm142, %v138
    %144 = vst.msk [vmem:[#allocation2 + $0x8] sm:$0xff] %vm142, %v139
    %145 = vst.msk [vmem:[#allocation2 + $0x10] sm:$0xff] %vm142, %v140
    %146 = vst.msk [vmem:[#allocation2 + $0x18] sm:$0xff] %vm142, %v141
    // Predicated region
    $region18: #{tpu_custom_call.1} parent=1 // pred_check
      %p147 = pneg %p15
    $region19: #{tpu_custom_call.1} parent=1 // pred_check_branch
      %149 = sbr.rel (%p147) target = $region21
    $region20: #{tpu_custom_call.1} parent=1 // pred_region
      %v150 = vld [vmem:[#allocation2] sm:$0xff]
      %v151 = vld [vmem:[#allocation2 + $0x8] sm:$0xff]
      %v152 = vld [vmem:[#allocation2 + $0x10] sm:$0xff]
      %v153 = vld [vmem:[#allocation2 + $0x18] sm:$0xff]
      %v154 = vld [vmem:[%s2] sm:$0x1]
      %v156 = vlaneseq
      %v157 = vshrl.u32 %v156, 7
      %v158 = vsub.s32 0, %v157
      %v159 = vrot.slane %v154, %v158
      %v161 = vadd.f32 %v150, %v159
      %v162 = vadd.f32 %v151, %v159
      %v163 = vadd.f32 %v152, %v159
      %v164 = vadd.f32 %v153, %v159
      %165 = vst.msk [vmem:[#allocation3] sm:$0xff] %vm142, %v161
      %166 = vst.msk [vmem:[#allocation3 + $0x8] sm:$0xff] %vm142, %v162
      %167 = vst.msk [vmem:[#allocation3 + $0x10] sm:$0xff] %vm142, %v163
      %168 = vst.msk [vmem:[#allocation3 + $0x18] sm:$0xff] %vm142, %v164
    $region21: #{tpu_custom_call.1} parent=1 // pred_fallthru
      _
    // Predicated region
    $region22: #{tpu_custom_call.1} parent=1 // pred_check
      _
    $region23: #{tpu_custom_call.1} parent=1 // pred_check_branch
      %170 = sbr.rel (0) target = $region25
    $region24: #{tpu_custom_call.1} parent=1 // pred_region
      %s172 = ssub.s32 512, 512
      %173 = vsyncadd [#allocation4], %s172
      %s174 = sshll.u32 [#allocation3], 4
      %s175 = int_to_ptr.vmem [resolvable:$true] %s174
      %180 = dma.vmem_to_hbm [thread:$0]  %s175, 512, %s3, [#allocation4], 128, 128, 8
    $region25: #{tpu_custom_call.1} parent=1 // pred_fallthru
      _
    // Predicated region
    $region26: #{tpu_custom_call.1} parent=1 // pred_check
      _
    $region27: #{tpu_custom_call.1} parent=1 // pred_check_branch
      %182 = sbr.rel (0) target = $region29
    $region28: #{tpu_custom_call.1} parent=1 // pred_region
      %183 = dma.done [#allocation4], 512
    $region29: #{tpu_custom_call.1} parent=1 // pred_fallthru
      _
    %184 = vsyncpa [#allocation4], 1

</llo_original>
